<compile_context>
chip_gen: v5e
topology: v5e:2x2
jax: 0.10.0
libtpu: 0.0.40
codegen_flags: <defaults>
</compile_context>

<pallas_src>
import jax
import jax.numpy as jnp
from jax.experimental import pallas as pl
from jax.experimental.pallas import tpu as pltpu

_LANE = 128
_DEF_SEQ_CHUNK = 512          # multiple of 16 (bf16 sublane packing)


def _round_up(x, m):
    return ((x + m - 1) // m) * m


def _vmem_capacity_bytes():
    """Generation-aware VMEM capacity (v5e/v6e: 128 MiB, v7x: 64 MiB)."""
    try:
        return int(pltpu.get_tpu_info().vmem_capacity_bytes)
    except Exception:
        return 64 * 1024 * 1024   # conservative (v7x-sized) fallback


def _pick_tiling(B, S, H, h_itemsize, E_pad, C_pad, D1):
    """Pick (TB, B_out, CHUNK, S_pad, vmem_limit) without ever padding hidden_states."""
    cap = _vmem_capacity_bytes()
    # leave headroom under the physical capacity; well above the 16/32 MiB scoped defaults
    vmem_limit = int(max(cap * 0.75, cap - 16 * 1024 * 1024))

    chunk = S if S <= _DEF_SEQ_CHUNK else _DEF_SEQ_CHUNK
    s_pad = _round_up(S, chunk)

    # VMEM that does not scale with the batch tile: weights/biases (double-buffered by
    # the default pipeline even though their index_map is constant).
    weight_bytes = 4 * 2 * (H * E_pad + E_pad + E_pad * D1 + D1 + D1 * C_pad + C_pad)
    budget = vmem_limit - weight_bytes - (4 << 20)      # slack for compiler internals

    # Per-batch-row VMEM: hidden double buffer (native dtype), mask double buffer
    # ((TB, CHUNK, 1) is lane-padded to 128 in VMEM), in-body temporaries (~one f32
    # chunk), f32 accumulators, output double buffers.
    per_row = (chunk * H * h_itemsize * 2
               + chunk * _LANE * 4 * 2
               + chunk * H * 4
               + (H + 1) * 4
               + (E_pad + C_pad) * 4 * 2)
    max_tb = max(1, budget // per_row)

    def layout_ok(t):   # keeps every (TB, ...) BlockSpec (8,128)-legal without padding
        return t == B or t % 8 == 0

    cands = [t for t in range(1, B + 1) if B % t == 0 and layout_ok(t) and t <= max_tb]
    if cands:
        tb = max(cands)
        # prefer >= 2 batch tiles so the "parallel" axis can shard across TensorCores
        proper = [t for t in cands if t < B and t >= max(8, B // 8)]
        if B >= 16 and proper:
            tb = max(proper)
        b_out = B
    else:
        # No clean divisor fits the VMEM budget: multiple-of-8 tile; the ragged last
        # tile reads out-of-bounds hidden rows (neutralized by the in-kernel select and
        # a zero-padded mask). hidden_states itself is never copied or padded.
        tb = min(_round_up(B, 8), max(8, (max_tb // 8) * 8))
        b_out = _round_up(B, tb)

    return tb, b_out, chunk, s_pad, vmem_limit


def _multitask_kernel(h_ref, m_ref,
                      wp_ref, bp_ref,
                      w1_ref, b1_ref,
                      w2_ref, b2_ref,
                      emb_ref, sent_ref,
                      sum_ref, cnt_ref):
    """Masked-sum accumulation over seq chunks; pooling + projection + MLP at the end.

    h_ref    : (TB, CHUNK, H)  transformer last_hidden_state chunk (native dtype)
    m_ref    : (TB, CHUNK, 1)  attention mask chunk (f32, exact — zero-padded in wrapper)
    wp_ref   : (H, E_pad)      projection weight,   bp_ref: (1, E_pad)
    w1_ref   : (E_pad, 256)    classifier layer 1,  b1_ref: (1, 256)
    w2_ref   : (256, C_pad)    classifier layer 2,  b2_ref: (1, C_pad)
    emb_ref  : (TB, E_pad)     output embedding (padded lanes are zero)
    sent_ref : (TB, C_pad)     output sentiment logits (padded lanes are zero)
    sum_ref  : (TB, H)  f32    masked-sum accumulator (scratch)
    cnt_ref  : (TB, 1)  f32    token-count accumulator (scratch)
    """
    s = pl.program_id(1)

    @pl.when(s == 0)
    def _init():
        sum_ref[...] = jnp.zeros_like(sum_ref)
        cnt_ref[...] = jnp.zeros_like(cnt_ref)

    m = m_ref[...]                                     # (TB, CHUNK, 1) f32, exact
    hc = h_ref[...]                                    # (TB, CHUNK, H) native dtype
    # Select (not multiply): mask is {0,1} so this equals h * mask exactly, and any
    # garbage from an out-of-bounds tail block (ragged B or S) never reaches the sum.
    contrib = jnp.where(m > 0.0, hc, jnp.zeros_like(hc))
    sum_ref[...] += jnp.sum(contrib, axis=1, dtype=jnp.float32)
    cnt_ref[...] += jnp.sum(m, axis=1)

    @pl.when(s == pl.num_programs(1) - 1)
    def _finalize():
        counts = jnp.maximum(cnt_ref[...], 1.0)        # guard all-padding rows (no NaN)
        pooled = sum_ref[...] / counts                 # exact mean (only TB scalars)

        # projection (use_projection == True since embedding_dim != transformer_dim)
        proj = jnp.dot(pooled, wp_ref[...],
                       preferred_element_type=jnp.float32) + bp_ref[...]     # (TB, E_pad)
        emb_ref[...] = proj.astype(emb_ref.dtype)

        # sentiment classifier: Linear -> ReLU -> Dropout(0.1) -> Linear
        # TODO(synk): Dropout is identity here (inference / eval semantics).
        hidden = jnp.maximum(
            jnp.dot(proj, w1_ref[...], preferred_element_type=jnp.float32) + b1_ref[...],
            0.0)                                                             # (TB, 256)
        logits = jnp.dot(hidden, w2_ref[...],
                         preferred_element_type=jnp.float32) + b2_ref[...]   # (TB, C_pad)
        sent_ref[...] = logits.astype(sent_ref.dtype)


def sentence_transformer_multitask(hidden_states, attention_mask, params):
    """Returns dict with 'embedding' (B, E) and 'sentiment' (B, C) float32 arrays."""
    B, S, H = hidden_states.shape
    E = params["wp"].shape[1]
    C = params["w2"].shape[1]
    D1 = params["w1"].shape[1]          # 256

    E_pad = _round_up(E, _LANE)
    C_pad = _round_up(C, _LANE)
    h_itemsize = jnp.dtype(hidden_states.dtype).itemsize

    TB, B_out, CHUNK, S_pad, vmem_limit = _pick_tiling(
        B, S, H, h_itemsize, E_pad, C_pad, D1)
    grid_b = B_out // TB
    grid_s = S_pad // CHUNK

    f32 = jnp.float32
    # Lane-dense / MXU-friendly zero padding of the small E and C dims. Padded weight
    # columns/rows are zero, so padded output lanes are exactly zero and are sliced
    # off below. (H is used as the full-dim lane axis; multiples of 128 are fastest.)
    wp = jnp.zeros((H, E_pad), f32).at[:, :E].set(params["wp"].astype(f32))
    bp = jnp.zeros((1, E_pad), f32).at[:, :E].set(params["bp"].reshape(1, E).astype(f32))
    w1 = jnp.zeros((E_pad, D1), f32).at[:E, :].set(params["w1"].astype(f32))
    b1 = params["b1"].reshape(1, D1).astype(f32)
    w2 = jnp.zeros((D1, C_pad), f32).at[:, :C].set(params["w2"].astype(f32))
    b2 = jnp.zeros((1, C_pad), f32).at[:, :C].set(params["b2"].reshape(1, C).astype(f32))

    # The mask is tiny: zero-pad it to the tile grid (batch and seq) and pre-shape it
    # to (B_out, S_pad, 1) so each chunk lands sublane-major in VMEM (no per-chunk
    # lane->sublane relayout). hidden_states is NEVER padded or copied.
    mask = attention_mask.astype(f32)
    if B_out != B or S_pad != S:
        mask = jnp.pad(mask, ((0, B_out - B), (0, S_pad - S)))
    mask3 = mask[:, :, None]

    flops = 2 * B * S * H + 2 * B_out * (H * E_pad + E_pad * D1 + D1 * C_pad)
    bytes_accessed = (B * S * H * h_itemsize + B_out * S_pad * 4
                      + 4 * (wp.size + bp.size + w1.size + b1.size + w2.size + b2.size)
                      + B_out * (E_pad + C_pad) * 4)

    emb, sent = pl.pallas_call(
        _multitask_kernel,
        grid=(grid_b, grid_s),
        in_specs=[
            pl.BlockSpec((TB, CHUNK, H), lambda i, s: (i, s, 0)),   # streamed, native dtype
            pl.BlockSpec((TB, CHUNK, 1), lambda i, s: (i, s, 0)),   # mask, pre-shaped (..,1)
            # Weights: constant index_map keeps them VMEM-resident across the grid.
            # TODO(synk): pipeline_mode=pl.Buffered(1) would halve their (small) VMEM
            # footprint; left at the default buffering to keep lowering conservative.
            pl.BlockSpec((H, E_pad), lambda i, s: (0, 0)),
            pl.BlockSpec((1, E_pad), lambda i, s: (0, 0)),
            pl.BlockSpec((E_pad, D1), lambda i, s: (0, 0)),
            pl.BlockSpec((1, D1), lambda i, s: (0, 0)),
            pl.BlockSpec((D1, C_pad), lambda i, s: (0, 0)),
            pl.BlockSpec((1, C_pad), lambda i, s: (0, 0)),
        ],
        out_specs=(
            pl.BlockSpec((TB, E_pad), lambda i, s: (i, 0)),
            pl.BlockSpec((TB, C_pad), lambda i, s: (i, 0)),
        ),
        out_shape=(
            jax.ShapeDtypeStruct((B_out, E_pad), jnp.float32),
            jax.ShapeDtypeStruct((B_out, C_pad), jnp.float32),
        ),
        scratch_shapes=[
            pltpu.VMEM((TB, H), jnp.float32),    # masked-sum accumulator
            pltpu.VMEM((TB, 1), jnp.float32),    # token-count accumulator
        ],
        compiler_params=pltpu.CompilerParams(
            # TODO(synk): for batch < 16 on v7x only one TensorCore runs the batch axis;
            # a 2-pass per-chunk-partials scheme would be needed to split the seq stream.
            dimension_semantics=("parallel", "arbitrary"),
            vmem_limit_bytes=vmem_limit,
        ),
        cost_estimate=pl.CostEstimate(
            flops=flops, transcendentals=0, bytes_accessed=bytes_accessed),
    )(hidden_states, mask3, wp, bp, w1, b1, w2, b2)

    return {"embedding": emb[:B, :E], "sentiment": sent[:B, :C]}


def init_params(key, transformer_dim, embedding_dim, num_sentiment_classes):
    """Deterministic parameter init. Weights stored as (in_features, out_features)."""
    ks = jax.random.split(key, 6)
    scale = 0.02
    wp = scale * jax.random.normal(ks[0], (transformer_dim, embedding_dim), jnp.float32)
    bp = scale * jax.random.normal(ks[1], (1, embedding_dim), jnp.float32)
    w1 = scale * jax.random.normal(ks[2], (embedding_dim, 256), jnp.float32)
    b1 = scale * jax.random.normal(ks[3], (1, 256), jnp.float32)
    w2 = scale * jax.random.normal(ks[4], (256, num_sentiment_classes), jnp.float32)
    b2 = scale * jax.random.normal(ks[5], (1, num_sentiment_classes), jnp.float32)
    return {"wp": wp, "bp": bp, "w1": w1, "b1": b1, "w2": w2, "b2": b2}


if __name__ == "__main__":
    # Small shapes consistent with the module:
    #   batch=2, seq=8, transformer_dim=64, embedding_dim=32 (!= 64 -> projection on),
    #   num_sentiment_classes=3.
    B, S, H, E, C = 2, 8, 64, 32, 3

    key = jax.random.PRNGKey(0)
    k_h, k_p = jax.random.split(key)

    # Synthetic transformer last_hidden_state (streamed as bf16) + ragged mask.
    hidden_states = jax.random.normal(k_h, (B, S, H), jnp.float32).astype(jnp.bfloat16)
    lengths = jnp.array([S, S // 2], dtype=jnp.int32)            # second sentence padded
    attention_mask = (jnp.arange(S)[None, :] < lengths[:, None]).astype(jnp.float32)

    params = init_params(k_p, transformer_dim=H, embedding_dim=E,
                         num_sentiment_classes=C)

    out = sentence_transformer_multitask(hidden_states, attention_mask, params)
    jax.block_until_ready(out)

    assert out["embedding"].shape == (B, E)
    assert out["sentiment"].shape == (B, C)

    # Reference in plain JAX from the same (bf16-quantized) hidden states.
    h_f32 = hidden_states.astype(jnp.float32)
    m = attention_mask[:, :, None]
    pooled = jnp.sum(h_f32 * m, axis=1) / jnp.maximum(jnp.sum(m, axis=1), 1.0)
    proj_ref = pooled @ params["wp"] + params["bp"]
    hid_ref = jnp.maximum(proj_ref @ params["w1"] + params["b1"], 0.0)
    sent_ref = hid_ref @ params["w2"] + params["b2"]
    assert jnp.allclose(out["embedding"], proj_ref, atol=2e-3, rtol=2e-2)
    assert jnp.allclose(out["sentiment"], sent_ref, atol=2e-3, rtol=2e-2)

    print("KERNEL_OK")
</pallas_src>

<mosaic_0001>
module attributes {stable_mosaic.version = 11 : i64} {
  func.func @_multitask_kernel(%arg0: i32, %arg1: i32, %arg2: memref<2x8x64xbf16, #tpu.memory_space<vmem>>, %arg3: memref<2x8x1xf32, #tpu.memory_space<vmem>>, %arg4: memref<64x128xf32, #tpu.memory_space<vmem>>, %arg5: memref<1x128xf32, #tpu.memory_space<vmem>>, %arg6: memref<128x256xf32, #tpu.memory_space<vmem>>, %arg7: memref<1x256xf32, #tpu.memory_space<vmem>>, %arg8: memref<256x128xf32, #tpu.memory_space<vmem>>, %arg9: memref<1x128xf32, #tpu.memory_space<vmem>>, %arg10: memref<2x128xf32, #tpu.memory_space<vmem>>, %arg11: memref<2x128xf32, #tpu.memory_space<vmem>>, %arg12: memref<2x64xf32, #tpu.memory_space<vmem>>, %arg13: memref<2x1xf32, #tpu.memory_space<vmem>>) attributes {dimension_semantics = [#tpu.dimension_semantics<parallel>, #tpu.dimension_semantics<arbitrary>], iteration_bounds = array<i64: 1, 1>, scalar_prefetch = 0 : i64, scratch_operands = 2 : i64, tpu.core_type = #tpu.core_type<tc>, window_params = [{transform_indices = @transform_0, window_bounds = array<i64: 2, 8, 64>}, {transform_indices = @transform_1, window_bounds = array<i64: 2, 8, 1>}, {pipeline_mode = #tpu.pipeline_mode<synchronous>, transform_indices = @transform_2, window_bounds = array<i64: 64, 128>}, {pipeline_mode = #tpu.pipeline_mode<synchronous>, transform_indices = @transform_3, window_bounds = array<i64: 1, 128>}, {pipeline_mode = #tpu.pipeline_mode<synchronous>, transform_indices = @transform_4, window_bounds = array<i64: 128, 256>}, {pipeline_mode = #tpu.pipeline_mode<synchronous>, transform_indices = @transform_5, window_bounds = array<i64: 1, 256>}, {pipeline_mode = #tpu.pipeline_mode<synchronous>, transform_indices = @transform_6, window_bounds = array<i64: 256, 128>}, {pipeline_mode = #tpu.pipeline_mode<synchronous>, transform_indices = @transform_7, window_bounds = array<i64: 1, 128>}, {transform_indices = @transform_8, window_bounds = array<i64: 2, 128>}, {transform_indices = @transform_9, window_bounds = array<i64: 2, 128>}]} {
    %c0_i32 = arith.constant 0 : i32
    %0 = arith.cmpi eq, %arg1, %c0_i32 : i32
    %1 = arith.extui %0 : i1 to i32
    %c0_i32_0 = arith.constant 0 : i32
    %2 = arith.cmpi ne, %1, %c0_i32_0 : i32
    scf.if %2 {
      %cst_19 = arith.constant 0.000000e+00 : f32
      %23 = vector.broadcast %cst_19 : f32 to vector<2x64xf32>
      %c0_20 = arith.constant 0 : index
      %c0_21 = arith.constant 0 : index
      %24 = vector.load %arg12[%c0_20, %c0_21] : memref<2x64xf32, #tpu.memory_space<vmem>>, vector<2x64xf32>
      tpu.vector_store %arg12[%c0_20, %c0_21], %23 {strides = array<i32>} : memref<2x64xf32, #tpu.memory_space<vmem>>, vector<2x64xf32>,
      %cst_22 = arith.constant 0.000000e+00 : f32
      %25 = vector.broadcast %cst_22 : f32 to vector<2x1xf32>
      %c0_23 = arith.constant 0 : index
      %c0_24 = arith.constant 0 : index
      %26 = vector.load %arg13[%c0_23, %c0_24] : memref<2x1xf32, #tpu.memory_space<vmem>>, vector<2x1xf32>
      tpu.vector_store %arg13[%c0_23, %c0_24], %25 {strides = array<i32>} : memref<2x1xf32, #tpu.memory_space<vmem>>, vector<2x1xf32>,
    } else {
    }
    %c0 = arith.constant 0 : index
    %c0_1 = arith.constant 0 : index
    %c0_2 = arith.constant 0 : index
    %3 = vector.load %arg3[%c0, %c0_1, %c0_2] : memref<2x8x1xf32, #tpu.memory_space<vmem>>, vector<2x8x1xf32>
    %c0_3 = arith.constant 0 : index
    %c0_4 = arith.constant 0 : index
    %c0_5 = arith.constant 0 : index
    %4 = vector.load %arg2[%c0_3, %c0_4, %c0_5] : memref<2x8x64xbf16, #tpu.memory_space<vmem>>, vector<2x8x64xbf16>
    %cst = arith.constant 0.000000e+00 : f32
    %5 = vector.broadcast %cst : f32 to vector<2x8x1xf32>
    %6 = arith.cmpf ogt, %3, %5 : vector<2x8x1xf32>
    %cst_6 = arith.constant 0.000000e+00 : bf16
    %7 = vector.broadcast %cst_6 : bf16 to vector<2x8x64xbf16>
    %8 = vector.shape_cast %6 : vector<2x8x1xi1> to vector<2x8x1xi1>
    %9 = vector.broadcast %8 : vector<2x8x1xi1> to vector<2x8x64xi1>
    %10 = arith.select %9, %4, %7 : vector<2x8x64xi1>, vector<2x8x64xbf16>
    %c0_7 = arith.constant 0 : index
    %c0_8 = arith.constant 0 : index
    %11 = vector.load %arg12[%c0_7, %c0_8] : memref<2x64xf32, #tpu.memory_space<vmem>>, vector<2x64xf32>
    %12 = arith.extf %10 : vector<2x8x64xbf16> to vector<2x8x64xf32>
    %cst_9 = arith.constant dense<0.000000e+00> : vector<2x64xf32>
    %13 = vector.multi_reduction <add>, %12, %cst_9 [1] : vector<2x8x64xf32> to vector<2x64xf32>
    %14 = arith.addf %11, %13 : vector<2x64xf32>
    %c0_10 = arith.constant 0 : index
    %c0_11 = arith.constant 0 : index
    %15 = vector.load %arg12[%c0_10, %c0_11] : memref<2x64xf32, #tpu.memory_space<vmem>>, vector<2x64xf32>
    tpu.vector_store %arg12[%c0_10, %c0_11], %14 {strides = array<i32>} : memref<2x64xf32, #tpu.memory_space<vmem>>, vector<2x64xf32>,
    %c0_12 = arith.constant 0 : index
    %c0_13 = arith.constant 0 : index
    %16 = vector.load %arg13[%c0_12, %c0_13] : memref<2x1xf32, #tpu.memory_space<vmem>>, vector<2x1xf32>
    %cst_14 = arith.constant dense<0.000000e+00> : vector<2x1xf32>
    %17 = vector.multi_reduction <add>, %3, %cst_14 [1] : vector<2x8x1xf32> to vector<2x1xf32>
    %18 = arith.addf %16, %17 : vector<2x1xf32>
    %c0_15 = arith.constant 0 : index
    %c0_16 = arith.constant 0 : index
    %19 = vector.load %arg13[%c0_15, %c0_16] : memref<2x1xf32, #tpu.memory_space<vmem>>, vector<2x1xf32>
    tpu.vector_store %arg13[%c0_15, %c0_16], %18 {strides = array<i32>} : memref<2x1xf32, #tpu.memory_space<vmem>>, vector<2x1xf32>,
    %c0_i32_17 = arith.constant 0 : i32
    %20 = arith.cmpi eq, %arg1, %c0_i32_17 : i32
    %21 = arith.extui %20 : i1 to i32
    %c0_i32_18 = arith.constant 0 : i32
    %22 = arith.cmpi ne, %21, %c0_i32_18 : i32
    scf.if %22 {
      %c0_19 = arith.constant 0 : index
      %c0_20 = arith.constant 0 : index
      %23 = vector.load %arg13[%c0_19, %c0_20] : memref<2x1xf32, #tpu.memory_space<vmem>>, vector<2x1xf32>
      %cst_21 = arith.constant 1.000000e+00 : f32
      %24 = vector.broadcast %cst_21 : f32 to vector<2x1xf32>
      %25 = arith.maximumf %23, %24 : vector<2x1xf32>
      %c0_22 = arith.constant 0 : index
      %c0_23 = arith.constant 0 : index
      %26 = vector.load %arg12[%c0_22, %c0_23] : memref<2x64xf32, #tpu.memory_space<vmem>>, vector<2x64xf32>
      %27 = vector.broadcast %25 : vector<2x1xf32> to vector<2x64xf32>
      %28 = arith.divf %26, %27 : vector<2x64xf32>
      %c0_24 = arith.constant 0 : index
      %c0_25 = arith.constant 0 : index
      %29 = vector.load %arg4[%c0_24, %c0_25] : memref<64x128xf32, #tpu.memory_space<vmem>>, vector<64x128xf32>
      %cst_26 = arith.constant dense<0.000000e+00> : vector<2x128xf32>
      %30 = tpu.matmul %28, %29, %cst_26 {dimension_numbers = #tpu.dot_dimension_numbers<[1], [0], [0], [1], [0, 0, 1, 1], [], []>} : vector<2x64xf32>, vector<64x128xf32>, vector<2x128xf32> -> vector<2x128xf32>
      %c0_27 = arith.constant 0 : index
      %c0_28 = arith.constant 0 : index
      %31 = vector.load %arg5[%c0_27, %c0_28] : memref<1x128xf32, #tpu.memory_space<vmem>>, vector<1x128xf32>
      %32 = vector.broadcast %31 : vector<1x128xf32> to vector<2x128xf32>
      %33 = arith.addf %30, %32 : vector<2x128xf32>
      %c0_29 = arith.constant 0 : index
      %c0_30 = arith.constant 0 : index
      %34 = vector.load %arg10[%c0_29, %c0_30] : memref<2x128xf32, #tpu.memory_space<vmem>>, vector<2x128xf32>
      tpu.vector_store %arg10[%c0_29, %c0_30], %33 {strides = array<i32>} : memref<2x128xf32, #tpu.memory_space<vmem>>, vector<2x128xf32>,
      %c0_31 = arith.constant 0 : index
      %c0_32 = arith.constant 0 : index
      %35 = vector.load %arg6[%c0_31, %c0_32] : memref<128x256xf32, #tpu.memory_space<vmem>>, vector<128x256xf32>
      %cst_33 = arith.constant dense<0.000000e+00> : vector<2x256xf32>
      %36 = tpu.matmul %33, %35, %cst_33 {dimension_numbers = #tpu.dot_dimension_numbers<[1], [0], [0], [1], [0, 0, 1, 1], [], []>} : vector<2x128xf32>, vector<128x256xf32>, vector<2x256xf32> -> vector<2x256xf32>
      %c0_34 = arith.constant 0 : index
      %c0_35 = arith.constant 0 : index
      %37 = vector.load %arg7[%c0_34, %c0_35] : memref<1x256xf32, #tpu.memory_space<vmem>>, vector<1x256xf32>
      %38 = vector.broadcast %37 : vector<1x256xf32> to vector<2x256xf32>
      %39 = arith.addf %36, %38 : vector<2x256xf32>
      %cst_36 = arith.constant 0.000000e+00 : f32
      %40 = vector.broadcast %cst_36 : f32 to vector<2x256xf32>
      %41 = arith.maximumf %39, %40 : vector<2x256xf32>
      %c0_37 = arith.constant 0 : index
      %c0_38 = arith.constant 0 : index
      %42 = vector.load %arg8[%c0_37, %c0_38] : memref<256x128xf32, #tpu.memory_space<vmem>>, vector<256x128xf32>
      %cst_39 = arith.constant dense<0.000000e+00> : vector<2x128xf32>
      %43 = tpu.matmul %41, %42, %cst_39 {dimension_numbers = #tpu.dot_dimension_numbers<[1], [0], [0], [1], [0, 0, 1, 1], [], []>} : vector<2x256xf32>, vector<256x128xf32>, vector<2x128xf32> -> vector<2x128xf32>
      %c0_40 = arith.constant 0 : index
      %c0_41 = arith.constant 0 : index
      %44 = vector.load %arg9[%c0_40, %c0_41] : memref<1x128xf32, #tpu.memory_space<vmem>>, vector<1x128xf32>
      %45 = vector.broadcast %44 : vector<1x128xf32> to vector<2x128xf32>
      %46 = arith.addf %43, %45 : vector<2x128xf32>
      %c0_42 = arith.constant 0 : index
      %c0_43 = arith.constant 0 : index
      %47 = vector.load %arg11[%c0_42, %c0_43] : memref<2x128xf32, #tpu.memory_space<vmem>>, vector<2x128xf32>
      tpu.vector_store %arg11[%c0_42, %c0_43], %46 {strides = array<i32>} : memref<2x128xf32, #tpu.memory_space<vmem>>, vector<2x128xf32>,
    } else {
    }
    return
  }
  func.func @transform_0(%arg0: i32, %arg1: i32) -> (i32, i32, i32) {
    %c0_i32 = arith.constant 0 : i32
    %c0_i32_0 = arith.constant 0 : i32
    return %arg0, %arg1, %c0_i32 : i32, i32, i32
  }
  func.func @transform_1(%arg0: i32, %arg1: i32) -> (i32, i32, i32) {
    %c0_i32 = arith.constant 0 : i32
    %c0_i32_0 = arith.constant 0 : i32
    return %arg0, %arg1, %c0_i32 : i32, i32, i32
  }
  func.func @transform_2(%arg0: i32, %arg1: i32) -> (i32, i32) {
    %c0_i32 = arith.constant 0 : i32
    %c0_i32_0 = arith.constant 0 : i32
    %c0_i32_1 = arith.constant 0 : i32
    return %c0_i32, %c0_i32_0 : i32, i32
  }
  func.func @transform_3(%arg0: i32, %arg1: i32) -> (i32, i32) {
    %c0_i32 = arith.constant 0 : i32
    %c0_i32_0 = arith.constant 0 : i32
    %c0_i32_1 = arith.constant 0 : i32
    return %c0_i32, %c0_i32_0 : i32, i32
  }
  func.func @transform_4(%arg0: i32, %arg1: i32) -> (i32, i32) {
    %c0_i32 = arith.constant 0 : i32
    %c0_i32_0 = arith.constant 0 : i32
    %c0_i32_1 = arith.constant 0 : i32
    return %c0_i32, %c0_i32_0 : i32, i32
  }
  func.func @transform_5(%arg0: i32, %arg1: i32) -> (i32, i32) {
    %c0_i32 = arith.constant 0 : i32
    %c0_i32_0 = arith.constant 0 : i32
    %c0_i32_1 = arith.constant 0 : i32
    return %c0_i32, %c0_i32_0 : i32, i32
  }
  func.func @transform_6(%arg0: i32, %arg1: i32) -> (i32, i32) {
    %c0_i32 = arith.constant 0 : i32
    %c0_i32_0 = arith.constant 0 : i32
    %c0_i32_1 = arith.constant 0 : i32
    return %c0_i32, %c0_i32_0 : i32, i32
  }
  func.func @transform_7(%arg0: i32, %arg1: i32) -> (i32, i32) {
    %c0_i32 = arith.constant 0 : i32
    %c0_i32_0 = arith.constant 0 : i32
    %c0_i32_1 = arith.constant 0 : i32
    return %c0_i32, %c0_i32_0 : i32, i32
  }
  func.func @transform_8(%arg0: i32, %arg1: i32) -> (i32, i32) {
    %c0_i32 = arith.constant 0 : i32
    %c0_i32_0 = arith.constant 0 : i32
    return %arg0, %c0_i32 : i32, i32
  }
  func.func @transform_9(%arg0: i32, %arg1: i32) -> (i32, i32) {
    %c0_i32 = arith.constant 0 : i32
    %c0_i32_0 = arith.constant 0 : i32
    return %arg0, %c0_i32 : i32, i32
  }
}

</mosaic_0001>

<llo_original>
// kernel: tpu_custom_call.1
$region0: #{tpu_custom_call.1}
  #allocation0 [shape = 'u32[]', space=smem, size = 0x4, offset = 0x4, fixed_abs, tag = 'smem constant byte address 0x4 - core index']
  #allocation1 [shape = 'u32[72,128]{1,0:T(1,128)}', space=vmem, size = 0x9000, scoped, tag = 'internal scratch']
  #allocation2 [shape = 'f32[2,64]{1,0:T(2,128)}', space=vmem, size = 0x400, scoped, tag = 'scratch operand']
  #allocation3 [shape = 'f32[2,1]{1,0:T(2,128)}', space=vmem, size = 0x400, scoped, tag = 'scratch operand']
  %s0 = inlined_call_operand.vmem [shape: bf16[2,8,64], index: 0, kind: input, shape index: {}]
  %s1 = inlined_call_operand.vmem [shape: f32[2,8,1], index: 1, kind: input, shape index: {}]
  %s2 = inlined_call_operand.hbm [shape: f32[64,128], index: 2, kind: input, shape index: {}]
  %s3 = inlined_call_operand.vmem [shape: f32[1,128], index: 3, kind: input, shape index: {}]
  %s4 = inlined_call_operand.hbm [shape: f32[128,256], index: 4, kind: input, shape index: {}]
  %s5 = inlined_call_operand.vmem [shape: f32[1,256], index: 5, kind: input, shape index: {}]
  %s6 = inlined_call_operand.hbm [shape: f32[256,128], index: 6, kind: input, shape index: {}]
  %s7 = inlined_call_operand.vmem [shape: f32[1,128], index: 7, kind: input, shape index: {}]
  %s8 = inlined_call_operand.hbm [shape: f32[2,128], index: 8, kind: output, shape index: {0}]
  %s9 = inlined_call_operand.hbm [shape: f32[2,128], index: 9, kind: output, shape index: {1}]
  %10 = xla_tuple %s8, %s9
  %s11 = sld [smem:[#allocation0]]
  $region70: #{tpu_custom_call.1} parent=0
    _
  %s13 = ssub.s32 1, %s11
  %s14 = scalar_select 0, %s13, %s11
  $region1: #{tpu_custom_call.1} parent=0
    #allocation4 [shape = 'u8[32768]{0}', space=vmem, size = 0x8000, scoped, tag = 'input window, operand 2, single buffered']
    #allocation5 [shape = 's32[1]{0}', space=sflag, size = 0x4, scoped, tag = 'scoped memory for tpu_custom_call.1']
    #allocation6 [shape = 's32[1]{0}', space=sflag, size = 0x4, scoped, tag = 'scoped memory for tpu_custom_call.1']
    #allocation7 [shape = 'u8[131072]{0}', space=vmem, size = 0x20000, scoped, tag = 'input window, operand 4, single buffered']
    #allocation8 [shape = 's32[1]{0}', space=sflag, size = 0x4, scoped, tag = 'scoped memory for tpu_custom_call.1']
    #allocation9 [shape = 'u8[131072]{0}', space=vmem, size = 0x20000, scoped, tag = 'input window, operand 6, single buffered']
    #allocation10 [shape = 'u8[1024]{0}', space=vmem, size = 0x400, scoped, tag = 'output window, operand 0, single buffered']
    #allocation11 [shape = 'u8[1024]{0}', space=vmem, size = 0x400, scoped, tag = 'output window, operand 1, single buffered']
    #allocation12 [shape = 's32[1]{0}', space=sflag, size = 0x4, scoped, tag = 'scoped memory for tpu_custom_call.1']
    %15 = vsyncpa [#allocation5], 0
    %16 = vsyncpa [#allocation8], 0
    %17 = vsyncpa [#allocation6], 0
    %18 = vsyncpa [#allocation12], 0
    // Predicated region
    $region2: #{tpu_custom_call.1} parent=1 // pred_check
      _
    $region3: #{tpu_custom_call.1} parent=1 // pred_check_branch
      %20 = sbr.rel (0) target = $region5
    $region4: #{tpu_custom_call.1} parent=1 // pred_region
      _
    $region5: #{tpu_custom_call.1} parent=1 // pred_fallthru
      _
    // Predicated region
    $region6: #{tpu_custom_call.1} parent=1 // pred_check
      _
    $region7: #{tpu_custom_call.1} parent=1 // pred_check_branch
      %22 = sbr.rel (0) target = $region9
    $region8: #{tpu_custom_call.1} parent=1 // pred_region
      _
    $region9: #{tpu_custom_call.1} parent=1 // pred_fallthru
      _
    // Predicated region
    $region10: #{tpu_custom_call.1} parent=1 // pred_check
      _
    $region11: #{tpu_custom_call.1} parent=1 // pred_check_branch
      %24 = sbr.rel (0) target = $region13
    $region12: #{tpu_custom_call.1} parent=1 // pred_region
      %26 = vsyncadd [#allocation5], 0
      %s27 = sshll.u32 %s2, 4
      %s28 = int_to_ptr.hbm [resolvable:$true] %s27
      %s29 = sshll.u32 [#allocation4], 4
      %s30 = int_to_ptr.vmem [resolvable:$true] %s29
      %35 = dma.hbm_to_vmem [thread:$0]  %s28, 1024, %s30, [#allocation5], 128, 128, 8
    $region13: #{tpu_custom_call.1} parent=1 // pred_fallthru
      _
    // Predicated region
    $region14: #{tpu_custom_call.1} parent=1 // pred_check
      _
    $region15: #{tpu_custom_call.1} parent=1 // pred_check_branch
      %37 = sbr.rel (0) target = $region17
    $region16: #{tpu_custom_call.1} parent=1 // pred_region
      _
    $region17: #{tpu_custom_call.1} parent=1 // pred_fallthru
      _
    // Predicated region
    $region18: #{tpu_custom_call.1} parent=1 // pred_check
      _
    $region19: #{tpu_custom_call.1} parent=1 // pred_check_branch
      %39 = sbr.rel (0) target = $region21
    $region20: #{tpu_custom_call.1} parent=1 // pred_region
      %41 = vsyncadd [#allocation8], 0
      %s42 = sshll.u32 %s4, 4
      %s43 = int_to_ptr.hbm [resolvable:$true] %s42
      %s44 = sshll.u32 [#allocation7], 4
      %s45 = int_to_ptr.vmem [resolvable:$true] %s44
      %50 = dma.hbm_to_vmem [thread:$0]  %s43, 4096, %s45, [#allocation8], 256, 256, 16
    $region21: #{tpu_custom_call.1} parent=1 // pred_fallthru
      _
    // Predicated region
    $region22: #{tpu_custom_call.1} parent=1 // pred_check
      _
    $region23: #{tpu_custom_call.1} parent=1 // pred_check_branch
      %52 = sbr.rel (0) target = $region25
    $region24: #{tpu_custom_call.1} parent=1 // pred_region
      _
    $region25: #{tpu_custom_call.1} parent=1 // pred_fallthru
      _
    // Predicated region
    $region26: #{tpu_custom_call.1} parent=1 // pred_check
      _
    $region27: #{tpu_custom_call.1} parent=1 // pred_check_branch
      %54 = sbr.rel (0) target = $region29
    $region28: #{tpu_custom_call.1} parent=1 // pred_region
      %56 = vsyncadd [#allocation8], 0
      %s57 = sshll.u32 %s6, 4
      %s58 = int_to_ptr.hbm [resolvable:$true] %s57
      %s59 = sshll.u32 [#allocation9], 4
      %s60 = int_to_ptr.vmem [resolvable:$true] %s59
      %65 = dma.hbm_to_vmem [thread:$0]  %s58, 4096, %s60, [#allocation8], 128, 128, 8
    $region29: #{tpu_custom_call.1} parent=1 // pred_fallthru
      _
    // Predicated region
    $region30: #{tpu_custom_call.1} parent=1 // pred_check
      _
    $region31: #{tpu_custom_call.1} parent=1 // pred_check_branch
      %67 = sbr.rel (0) target = $region33
    $region32: #{tpu_custom_call.1} parent=1 // pred_region
      _
    $region33: #{tpu_custom_call.1} parent=1 // pred_fallthru
      _
    // Predicated region
    $region34: #{tpu_custom_call.1} parent=1 // pred_check
      _
    $region35: #{tpu_custom_call.1} parent=1 // pred_check_branch
      %69 = sbr.rel (0) target = $region37
    $region36: #{tpu_custom_call.1} parent=1 // pred_region
      %71 = dma.done [#allocation5], 1024
    $region37: #{tpu_custom_call.1} parent=1 // pred_fallthru
      _
    // Predicated region
    $region38: #{tpu_custom_call.1} parent=1 // pred_check
      _
    $region39: #{tpu_custom_call.1} parent=1 // pred_check_branch
      %73 = sbr.rel (0) target = $region41
    $region40: #{tpu_custom_call.1} parent=1 // pred_region
      %75 = dma.done [#allocation8], 4096
    $region41: #{tpu_custom_call.1} parent=1 // pred_fallthru
      _
    // Predicated region
    $region42: #{tpu_custom_call.1} parent=1 // pred_check
      _
    $region43: #{tpu_custom_call.1} parent=1 // pred_check_branch
      %77 = sbr.rel (0) target = $region45
    $region44: #{tpu_custom_call.1} parent=1 // pred_region
      %79 = dma.done [#allocation8], 4096
    $region45: #{tpu_custom_call.1} parent=1 // pred_fallthru
      _
    %p81 = scmp.eq.s32.totalorder 0, 0
    // Predicated region
    $region46: #{tpu_custom_call.1} parent=1 // pred_check
      %p82 = pneg %p81
    $region47: #{tpu_custom_call.1} parent=1 // pred_check_branch
      %84 = sbr.rel (%p82) target = $region49
    $region48: #{tpu_custom_call.1} parent=1 // pred_region
      %vm85 = vcmask 517120
      %86 = vst.msk [vmem:[#allocation2] sm:$0x3] %vm85, 0.0
      %vm87 = vcmask 1024
      %88 = vst.msk [vmem:[#allocation3] sm:$0x3] %vm87, 0.0
    $region49: #{tpu_custom_call.1} parent=1 // pred_fallthru
      _
    %v89 = vld [vmem:[%s1] sm:$0xff]
    %v90 = vld [vmem:[%s1 + $0x8] sm:$0xff]
    %v91 = vld [vmem:[%s0] sm:$0xf]
    %v92 = vld [vmem:[%s0 + $0x4] sm:$0xf]
    %vm93 = vcmp.gt.f32.partialorder %v89, 0.0
    %vm94 = vcmp.gt.f32.partialorder %v90, 0.0
    %v95 = vsel %vm93, 1, 0
    %v96 = vsel %vm94, 1, 0
    %97 = vset.pattern.permute.xlu0 0
    %98 = vperm.xlu0 %97, %v95
    %v99 = vpop.permute.xlu0 %98
    %100 = vset.pattern.permute.xlu0 0
    %101 = vperm.xlu0 %100, %v96
    %v102 = vpop.permute.xlu0 %101
    %vm103 = vcmp.eq.s32.totalorder %v99, 1
    %vm104 = vcmp.eq.s32.totalorder %v102, 1
    %vm105 = vmpackc.low %vm103, %vm103
    %vm106 = vmpackc.low %vm104, %vm104
    %v107 = vsel %vm105, %v91, 0
    %v108 = vsel %vm106, %v92, 0
    %v109 = vld [vmem:[#allocation2] sm:$0x3]
    %v110 = vunpack.c.l.bf16 %v107
    %v111 = vunpack.c.l.bf16 %v108
    %vm112 = vcmask 523264
    %v113 = vsel %vm112, %v110, 0.0
    %v114 = vrot.slane %v113, 4
    %v115 = vadd.f32 %v113, %v114
    %v116 = vrot.slane %v115, 2
    %v117 = vadd.f32 %v115, %v116
    %v118 = vrot.slane %v117, 1
    %v119 = vadd.f32 %v117, %v118
    %v120 = vsel %vm112, %v111, 0.0
    %v121 = vrot.slane %v120, 4
    %v122 = vadd.f32 %v120, %v121
    %v123 = vrot.slane %v122, 2
    %v124 = vadd.f32 %v122, %v123
    %v125 = vrot.slane %v124, 1
    %v126 = vadd.f32 %v124, %v125
    %vm129 = vcmask 1041409
    %v130 = vsel %vm129, %v126, %v119
    %v132 = vadd.f32 %v109, %v130
    %vm133 = vcmask 517120
    %134 = vst.msk [vmem:[#allocation2] sm:$0x3] %vm133, %v132
    %v135 = vld [vmem:[#allocation3] sm:$0x3]
    %vm136 = vcmask 7168
    %v137 = vsel %vm136, %v89, 0.0
    %v138 = vrot.slane %v137, 4
    %v139 = vadd.f32 %v137, %v138
    %v140 = vrot.slane %v139, 2
    %v141 = vadd.f32 %v139, %v140
    %v142 = vrot.slane %v141, 1
    %v143 = vadd.f32 %v141, %v142
    %v144 = vsel %vm136, %v90, 0.0
    %v145 = vrot.slane %v144, 4
    %v146 = vadd.f32 %v144, %v145
    %v147 = vrot.slane %v146, 2
    %v148 = vadd.f32 %v146, %v147
    %v149 = vrot.slane %v148, 1
    %v150 = vadd.f32 %v148, %v149
    %v153 = vsel %vm129, %v150, %v143
    %v155 = vadd.f32 %v135, %v153
    %vm156 = vcmask 1024
    %157 = vst.msk [vmem:[#allocation3] sm:$0x3] %vm156, %v155
    // Predicated region
    $region50: #{tpu_custom_call.1} parent=1 // pred_check
      %p158 = pneg %p81
    $region51: #{tpu_custom_call.1} parent=1 // pred_check_branch
      %160 = sbr.rel (%p158) target = $region53
    $region52: #{tpu_custom_call.1} parent=1 // pred_region
      %v161 = vld [vmem:[#allocation3] sm:$0x3]
      %v162 = vmax.f32 %v161, 1.0
      %v163 = vld [vmem:[#allocation2] sm:$0x3]
      %165 = vset.pattern.permute.xlu0 0
      %166 = vperm.xlu0 %165, %v162
      %v167 = vpop.permute.xlu0 %166
      %v169 = vrcp.pop %v167
      %v170 = vmul.f32 %v167, %v169
      %v171 = vsub.f32 1.0, %v170
      %v172 = vmul.f32 %v169, %v171
      %v173 = vadd.f32 %v169, %v172
      %vm174 = vweird.f32 %v167
      %vm175 = vweird.f32 %v169
      %vm176 = vmor %vm174, %vm175
      %v177 = vsel %vm176, %v169, %v173
      %v178 = vand.u32 2147483647, %v167
      %vm179 = vcmp.eq.f32.partialorder %v178, 8.507059e+37
      %v180 = vand.u32 %v167, 2147483648
      %v181 = vor.u32 1.1754944e-38, %v180
      %v182 = vsel %vm179, %v181, %v177
      %v183 = vmul.f32 %v163, %v182
      %v184 = vld [vmem:[#allocation4] sm:$0xff]
      %v185 = vld [vmem:[#allocation4 + $0x8] sm:$0xff]
      %v186 = vld [vmem:[#allocation4 + $0x10] sm:$0xff]
      %v187 = vld [vmem:[#allocation4 + $0x18] sm:$0xff]
      %v188 = vld [vmem:[#allocation4 + $0x20] sm:$0xff]
      %v189 = vld [vmem:[#allocation4 + $0x28] sm:$0xff]
      %v190 = vld [vmem:[#allocation4 + $0x30] sm:$0xff]
      %v191 = vld [vmem:[#allocation4 + $0x38] sm:$0xff]
      %v192 = vld [vmem:[%s3] sm:$0x1]
      %v194 = vperm.slane %v192, 0
      %v197 = vsel %vm112, %v183, 0
      %199 = vmatpush.msra.mxu0 0.0
      %200 = vmatpush.msra.mxu0 0.0
      %201 = vmatpush.msra.mxu0 0.0
      %202 = vmatpush.msra.mxu0 0.0
      %203 = vmatpush.msra.mxu0 0.0
      %204 = vmatpush.msra.mxu0 0.0
      %205 = vmatpush.msra.mxu0 0.0
      %206 = vmatpush.msra.mxu0 0.0
      %207 = vmatpush.msra.mxu0 %v191
      %208 = vmatpush.msra.mxu0 %v190
      %209 = vmatpush.msra.mxu0 %v189
      %210 = vmatpush.msra.mxu0 %v188
      %211 = vmatpush.msra.mxu0 %v187
      %212 = vmatpush.msra.mxu0 %v186
      %213 = vmatpush.msra.mxu0 %v185
      %214 = vmatpush.msra.mxu0 %v184
      %215 = vmatmul.f32.gmra.mxu0 %v197
      %v216 = vpop.f32.mrf.mxu0
      %v217 = vadd.f32 %v194, %v216
      %218 = vdwg.mxu0
      %219 = vst [vmem:[#allocation10] sm:$0x3] %v217
      %v220 = vld [vmem:[#allocation7] sm:$0xff]
      %v221 = vld [vmem:[#allocation7 + $0x8] sm:$0xff]
      %v222 = vld [vmem:[#allocation7 + $0x10] sm:$0xff]
      %v223 = vld [vmem:[#allocation7 + $0x18] sm:$0xff]
      %v224 = vld [vmem:[#allocation7 + $0x20] sm:$0xff]
      %v225 = vld [vmem:[#allocation7 + $0x28] sm:$0xff]
      %v226 = vld [vmem:[#allocation7 + $0x30] sm:$0xff]
      %v227 = vld [vmem:[#allocation7 + $0x38] sm:$0xff]
      %v228 = vld [vmem:[#allocation7 + $0x40] sm:$0xff]
      %v229 = vld [vmem:[#allocation7 + $0x48] sm:$0xff]
      %v230 = vld [vmem:[#allocation7 + $0x50] sm:$0xff]
      %v231 = vld [vmem:[#allocation7 + $0x58] sm:$0xff]
      %v232 = vld [vmem:[#allocation7 + $0x60] sm:$0xff]
      %v233 = vld [vmem:[#allocation7 + $0x68] sm:$0xff]
      %v234 = vld [vmem:[#allocation7 + $0x70] sm:$0xff]
      %v235 = vld [vmem:[#allocation7 + $0x78] sm:$0xff]
      %v236 = vld [vmem:[#allocation7 + $0x80] sm:$0xff]
      %v237 = vld [vmem:[#allocation7 + $0x88] sm:$0xff]
      %v238 = vld [vmem:[#allocation7 + $0x90] sm:$0xff]
      %v239 = vld [vmem:[#allocation7 + $0x98] sm:$0xff]
      %v240 = vld [vmem:[#allocation7 + $0xa0] sm:$0xff]
      %v241 = vld [vmem:[#allocation7 + $0xa8] sm:$0xff]
      %v242 = vld [vmem:[#allocation7 + $0xb0] sm:$0xff]
      %v243 = vld [vmem:[#allocation7 + $0xb8] sm:$0xff]
      %v244 = vld [vmem:[#allocation7 + $0xc0] sm:$0xff]
      %v245 = vld [vmem:[#allocation7 + $0xc8] sm:$0xff]
      %v246 = vld [vmem:[#allocation7 + $0xd0] sm:$0xff]
      %v247 = vld [vmem:[#allocation7 + $0xd8] sm:$0xff]
      %v248 = vld [vmem:[#allocation7 + $0xe0] sm:$0xff]
      %v249 = vld [vmem:[#allocation7 + $0xe8] sm:$0xff]
      %v250 = vld [vmem:[#allocation7 + $0xf0] sm:$0xff]
      %v251 = vld [vmem:[#allocation7 + $0xf8] sm:$0xff]
      %v252 = vld [vmem:[%s5] sm:$0x3]
      %v254 = vperm.slane %v252, 0
      %v255 = vperm.slane %v252, 1
      %258 = vmatpush.msra.mxu0 %v250
      %259 = vmatpush.msra.mxu0 %v248
      %260 = vmatpush.msra.mxu0 %v246
      %261 = vmatpush.msra.mxu0 %v244
      %262 = vmatpush.msra.mxu0 %v242
      %263 = vmatpush.msra.mxu0 %v240
      %264 = vmatpush.msra.mxu0 %v238
      %265 = vmatpush.msra.mxu0 %v236
      %266 = vmatpush.msra.mxu0 %v234
      %267 = vmatpush.msra.mxu0 %v232
      %268 = vmatpush.msra.mxu0 %v230
      %269 = vmatpush.msra.mxu0 %v228
      %270 = vmatpush.msra.mxu0 %v226
      %271 = vmatpush.msra.mxu0 %v224
      %272 = vmatpush.msra.mxu0 %v222
      %273 = vmatpush.msra.mxu0 %v220
      %274 = vmatmul.f32.gmra.mxu0 %v217
      %v275 = vpop.f32.mrf.mxu0
      %v276 = vadd.f32 %v254, %v275
      %277 = vdwg.mxu0
      %278 = vmatpush.msra.mxu0 %v251
      %279 = vmatpush.msra.mxu0 %v249
      %280 = vmatpush.msra.mxu0 %v247
      %281 = vmatpush.msra.mxu0 %v245
      %282 = vmatpush.msra.mxu0 %v243
      %283 = vmatpush.msra.mxu0 %v241
      %284 = vmatpush.msra.mxu0 %v239
      %285 = vmatpush.msra.mxu0 %v237
      %286 = vmatpush.msra.mxu0 %v235
      %287 = vmatpush.msra.mxu0 %v233
      %288 = vmatpush.msra.mxu0 %v231
      %289 = vmatpush.msra.mxu0 %v229
      %290 = vmatpush.msra.mxu0 %v227
      %291 = vmatpush.msra.mxu0 %v225
      %292 = vmatpush.msra.mxu0 %v223
      %293 = vmatpush.msra.mxu0 %v221
      %294 = vmatmul.f32.gmra.mxu0 %v217
      %v295 = vpop.f32.mrf.mxu0
      %v296 = vadd.f32 %v255, %v295
      %297 = vdwg.mxu0
      %v298 = vmax.f32 %v276, 0.0
      %v299 = vmax.f32 %v296, 0.0
      %v300 = vld [vmem:[#allocation9] sm:$0xff]
      %v301 = vld [vmem:[#allocation9 + $0x8] sm:$0xff]
      %v302 = vld [vmem:[#allocation9 + $0x10] sm:$0xff]
      %v303 = vld [vmem:[#allocation9 + $0x18] sm:$0xff]
      %v304 = vld [vmem:[#allocation9 + $0x20] sm:$0xff]
      %v305 = vld [vmem:[#allocation9 + $0x28] sm:$0xff]
      %v306 = vld [vmem:[#allocation9 + $0x30] sm:$0xff]
      %v307 = vld [vmem:[#allocation9 + $0x38] sm:$0xff]
      %v308 = vld [vmem:[#allocation9 + $0x40] sm:$0xff]
      %v309 = vld [vmem:[#allocation9 + $0x48] sm:$0xff]
      %v310 = vld [vmem:[#allocation9 + $0x50] sm:$0xff]
      %v311 = vld [vmem:[#allocation9 + $0x58] sm:$0xff]
      %v312 = vld [vmem:[#allocation9 + $0x60] sm:$0xff]
      %v313 = vld [vmem:[#allocation9 + $0x68] sm:$0xff]
      %v314 = vld [vmem:[#allocation9 + $0x70] sm:$0xff]
      %v315 = vld [vmem:[#allocation9 + $0x78] sm:$0xff]
      %v316 = vld [vmem:[#allocation9 + $0x80] sm:$0xff]
      %v317 = vld [vmem:[#allocation9 + $0x88] sm:$0xff]
      %v318 = vld [vmem:[#allocation9 + $0x90] sm:$0xff]
      %v319 = vld [vmem:[#allocation9 + $0x98] sm:$0xff]
      %v320 = vld [vmem:[#allocation9 + $0xa0] sm:$0xff]
      %v321 = vld [vmem:[#allocation9 + $0xa8] sm:$0xff]
      %v322 = vld [vmem:[#allocation9 + $0xb0] sm:$0xff]
      %v323 = vld [vmem:[#allocation9 + $0xb8] sm:$0xff]
      %v324 = vld [vmem:[#allocation9 + $0xc0] sm:$0xff]
      %v325 = vld [vmem:[#allocation9 + $0xc8] sm:$0xff]
      %v326 = vld [vmem:[#allocation9 + $0xd0] sm:$0xff]
      %v327 = vld [vmem:[#allocation9 + $0xd8] sm:$0xff]
      %v328 = vld [vmem:[#allocation9 + $0xe0] sm:$0xff]
      %v329 = vld [vmem:[#allocation9 + $0xe8] sm:$0xff]
      %v330 = vld [vmem:[#allocation9 + $0xf0] sm:$0xff]
      %v331 = vld [vmem:[#allocation9 + $0xf8] sm:$0xff]
      %v332 = vld [vmem:[%s7] sm:$0x1]
      %v334 = vperm.slane %v332, 0
      %336 = vmatpush.msra.mxu0 %v315
      %337 = vmatpush.msra.mxu0 %v314
      %338 = vmatpush.msra.mxu0 %v313
      %339 = vmatpush.msra.mxu0 %v312
      %340 = vmatpush.msra.mxu0 %v311
      %341 = vmatpush.msra.mxu0 %v310
      %342 = vmatpush.msra.mxu0 %v309
      %343 = vmatpush.msra.mxu0 %v308
      %344 = vmatpush.msra.mxu0 %v307
      %345 = vmatpush.msra.mxu0 %v306
      %346 = vmatpush.msra.mxu0 %v305
      %347 = vmatpush.msra.mxu0 %v304
      %348 = vmatpush.msra.mxu0 %v303
      %349 = vmatpush.msra.mxu0 %v302
      %350 = vmatpush.msra.mxu0 %v301
      %351 = vmatpush.msra.mxu0 %v300
      %352 = vmatmul.f32.gmra.mxu0 %v298
      %v353 = vpop.f32.mrf.mxu0
      %v354 = vadd.f32 %v334, %v353
      %355 = vdwg.mxu0
      %356 = vmatpush.msra.mxu0 %v331
      %357 = vmatpush.msra.mxu0 %v330
      %358 = vmatpush.msra.mxu0 %v329
      %359 = vmatpush.msra.mxu0 %v328
      %360 = vmatpush.msra.mxu0 %v327
      %361 = vmatpush.msra.mxu0 %v326
      %362 = vmatpush.msra.mxu0 %v325
      %363 = vmatpush.msra.mxu0 %v324
      %364 = vmatpush.msra.mxu0 %v323
      %365 = vmatpush.msra.mxu0 %v322
      %366 = vmatpush.msra.mxu0 %v321
      %367 = vmatpush.msra.mxu0 %v320
      %368 = vmatpush.msra.mxu0 %v319
      %369 = vmatpush.msra.mxu0 %v318
      %370 = vmatpush.msra.mxu0 %v317
      %371 = vmatpush.msra.mxu0 %v316
      %372 = vmatmul.f32.gmra.mxu0 %v299
      %v373 = vpop.f32.mrf.mxu0
      %v374 = vadd.f32 %v354, %v373
      %375 = vdwg.mxu0
      %376 = vst [vmem:[#allocation11] sm:$0x3] %v374
    $region53: #{tpu_custom_call.1} parent=1 // pred_fallthru
      _
    // Predicated region
    $region54: #{tpu_custom_call.1} parent=1 // pred_check
      _
    $region55: #{tpu_custom_call.1} parent=1 // pred_check_branch
      %378 = sbr.rel (0) target = $region57
    $region56: #{tpu_custom_call.1} parent=1 // pred_region
      %380 = vsyncadd [#allocation6], 0
      %s382 = sshll.u32 [#allocation10], 4
      %s383 = int_to_ptr.vmem [resolvable:$true] %s382
      %s384 = sshll.u32 %s8, 4
      %s385 = int_to_ptr.hbm [resolvable:$true] %s384
      %387 = dma.vmem_to_hbm [thread:$0]  %s383, 32, %s385, [#allocation6]
    $region57: #{tpu_custom_call.1} parent=1 // pred_fallthru
      _
    // Predicated region
    $region58: #{tpu_custom_call.1} parent=1 // pred_check
      _
    $region59: #{tpu_custom_call.1} parent=1 // pred_check_branch
      %389 = sbr.rel (0) target = $region61
    $region60: #{tpu_custom_call.1} parent=1 // pred_region
      %391 = vsyncadd [#allocation12], 0
      %s393 = sshll.u32 [#allocation11], 4
      %s394 = int_to_ptr.vmem [resolvable:$true] %s393
      %s395 = sshll.u32 %s9, 4
      %s396 = int_to_ptr.hbm [resolvable:$true] %s395
      %398 = dma.vmem_to_hbm [thread:$0]  %s394, 32, %s396, [#allocation12]
    $region61: #{tpu_custom_call.1} parent=1 // pred_fallthru
      _
    // Predicated region
    $region62: #{tpu_custom_call.1} parent=1 // pred_check
      _
    $region63: #{tpu_custom_call.1} parent=1 // pred_check_branch
      %400 = sbr.rel (0) target = $region65
    $region64: #{tpu_custom_call.1} parent=1 // pred_region
      %402 = dma.done [#allocation6], 32
    $region65: #{tpu_custom_call.1} parent=1 // pred_fallthru
      _
    // Predicated region
    $region66: #{tpu_custom_call.1} parent=1 // pred_check
      _
    $region67: #{tpu_custom_call.1} parent=1 // pred_check_branch
      %404 = sbr.rel (0) target = $region69
    $region68: #{tpu_custom_call.1} parent=1 // pred_region
      %406 = dma.done [#allocation12], 32
    $region69: #{tpu_custom_call.1} parent=1 // pred_fallthru
      _
    %407 = vsyncpa [#allocation5], 1
    %408 = vsyncpa [#allocation8], 1
    %409 = vsyncpa [#allocation6], 1
    %410 = vsyncpa [#allocation12], 1

</llo_original>
